<compile_context>
chip_gen: v6e
topology: v6e:2x2x1
jax: 0.10.0
libtpu: 0.0.40
codegen_flags: <defaults>
</compile_context>

<pallas_src>
import functools

import jax
import jax.numpy as jnp
from jax.experimental import pallas as pl
from jax.experimental.pallas import tpu as pltpu

EPSILON = 1e-8


def _soft_ce_partial_kernel(g_ref, q_ref, out_ref, *, n_rows, row_tile,
                            mask_tail, epsilon):
    g = g_ref[...].astype(jnp.float32)
    q = jnp.clip(q_ref[...].astype(jnp.float32), 0.0, 1.0)

    # Numerically-stable log(softmax(g) + eps) along the class (lane) axis,
    # without a per-element divide:
    #   softmax = e / s,  e = exp(g - m), s = sum(e)
    #   log(e/s + eps) = log(e + eps * s) - log(s)
    m = jnp.max(g, axis=1, keepdims=True)
    e = jnp.exp(g - m)
    s = jnp.sum(e, axis=1, keepdims=True)
    log_p_eps = jnp.log(e + jnp.float32(epsilon) * s) - jnp.log(s)

    contrib = q * log_p_eps

    if mask_tail:
        # Zero out rows that fall past the true batch size on the tail tile.
        i = pl.program_id(0)
        row_ids = i * row_tile + jax.lax.broadcasted_iota(
            jnp.int32, contrib.shape, 0)
        contrib = jnp.where(row_ids < n_rows, contrib, 0.0)

    # Per-lane partial sum for this row-tile (sublane reduce only; the tiny
    # cross-tile / cross-lane reduce happens in the JAX wrapper).
    out_ref[...] = jnp.sum(contrib, axis=0, keepdims=True)


def _default_row_tile(n_rows, n_cols, itemsize):
    # Sublane multiple required by (8, 128)-style tiling for this dtype.
    sublane = {4: 8, 2: 16, 1: 32}.get(itemsize, 8)
    # Pipelined input footprint: 2 inputs x 2 buffers x row_tile x C x itemsize.
    # Keep it <= ~16 MiB so it fits comfortably under a 32 MiB scoped VMEM
    # limit on every generation (v7x only has 64 MiB physical VMEM).
    input_budget = 16 * 1024 * 1024
    max_rows = input_budget // max(1, 4 * n_cols * itemsize)
    max_rows = max(sublane, min(max_rows, 1024))
    if n_rows <= max_rows:
        return n_rows  # single full-extent tile: always a legal block shape
    return (max_rows // sublane) * sublane


def soft_cross_entropy_loss(gij, qij, *, epsilon=EPSILON, row_tile=None,
                            vmem_limit_bytes=32 * 1024 * 1024):
    if gij.ndim != 2 or qij.ndim != 2:
        raise ValueError("Inputs to SoftCrossEntropyLoss must be 2D tensors!")
    if gij.shape != qij.shape:
        raise ValueError("gij and qij must have the same shape!")
    n_rows, n_cols = gij.shape
    itemsize = max(jnp.dtype(gij.dtype).itemsize, jnp.dtype(qij.dtype).itemsize)
    sublane = {4: 8, 2: 16, 1: 32}.get(itemsize, 8)

    if row_tile is None:
        row_tile = _default_row_tile(n_rows, n_cols, itemsize)
    if row_tile >= n_rows:
        row_tile = n_rows  # full-extent block, no divisibility constraint
    elif row_tile % sublane != 0:
        raise ValueError(
            f"row_tile must be a multiple of {sublane} (or >= N={n_rows}); "
            f"got {row_tile}")

    num_tiles = pl.cdiv(n_rows, row_tile)
    mask_tail = (n_rows % row_tile) != 0

    kernel = functools.partial(
        _soft_ce_partial_kernel,
        n_rows=n_rows, row_tile=row_tile, mask_tail=mask_tail, epsilon=epsilon)

    partials = pl.pallas_call(
        kernel,
        out_shape=jax.ShapeDtypeStruct((num_tiles, 1, n_cols), jnp.float32),
        grid_spec=pltpu.PrefetchScalarGridSpec(
            num_scalar_prefetch=0,
            grid=(num_tiles,),
            in_specs=[
                pl.BlockSpec((row_tile, n_cols), lambda i: (i, 0)),
                pl.BlockSpec((row_tile, n_cols), lambda i: (i, 0)),
            ],
            # One (1, C) per-lane partial per row-tile; each grid step owns a
            # distinct output block, so the axis can be "parallel" (megacore
            # sharding on v7x, harmless on single-TC v5e/v6e).
            out_specs=pl.BlockSpec((None, 1, n_cols), lambda i: (i, 0, 0)),
        ),
        compiler_params=pltpu.CompilerParams(
            dimension_semantics=("parallel",),
            vmem_limit_bytes=vmem_limit_bytes,
        ),
    )(gij, qij)

    # Tiny final reduction: negate and average over all N*C elements.
    return -jnp.sum(partials) / jnp.float32(n_rows * n_cols)


def soft_cross_entropy_loss_ref(gij, qij, epsilon=EPSILON):
    q = jnp.clip(qij.astype(jnp.float32), 0.0, 1.0)
    sm = jax.nn.softmax(gij.astype(jnp.float32), axis=1)
    return -jnp.mean(q * jnp.log(sm + epsilon))


if __name__ == "__main__":
    key = jax.random.PRNGKey(0)
    k1, k2, k3, k4 = jax.random.split(key, 4)

    # Case 1: small batch x num_classes (single full-extent tile).
    N, C = 16, 32
    gij = jax.random.normal(k1, (N, C), dtype=jnp.float32)
    # Soft credibility labels, with some values outside [0, 1] to exercise the
    # clamp (matching torch.clamp(qij, 0, 1)).
    qij = jax.random.uniform(k2, (N, C), dtype=jnp.float32,
                             minval=-0.2, maxval=1.2)

    loss = soft_cross_entropy_loss(gij, qij)
    jax.block_until_ready(loss)
    ref = soft_cross_entropy_loss_ref(gij, qij)
    assert jnp.allclose(loss, ref, rtol=1e-5, atol=1e-6), (loss, ref)

    # Case 2: multi-tile grid with a masked tail (N not a multiple of row_tile)
    # to exercise the cdiv grid + tail-mask path and per-tile partial outputs.
    N2, C2 = 300, 160
    g2 = jax.random.normal(k3, (N2, C2), dtype=jnp.float32)
    q2 = jax.random.uniform(k4, (N2, C2), dtype=jnp.float32,
                            minval=-0.2, maxval=1.2)

    loss2 = soft_cross_entropy_loss(g2, q2, row_tile=64)
    jax.block_until_ready(loss2)
    ref2 = soft_cross_entropy_loss_ref(g2, q2)
    assert jnp.allclose(loss2, ref2, rtol=1e-5, atol=1e-6), (loss2, ref2)

    print("KERNEL_OK")
</pallas_src>

<mosaic_0001>
module attributes {stable_mosaic.version = 11 : i64} {
  func.func @_soft_ce_partial_kernel(%arg0: i32, %arg1: memref<16x32xf32, #tpu.memory_space<vmem>>, %arg2: memref<16x32xf32, #tpu.memory_space<vmem>>, %arg3: memref<1x1x32xf32, #tpu.memory_space<vmem>>) attributes {dimension_semantics = [#tpu.dimension_semantics<parallel>], iteration_bounds = array<i64: 1>, scalar_prefetch = 0 : i64, scratch_operands = 0 : i64, tpu.core_type = #tpu.core_type<tc>, window_params = [{transform_indices = @transform_0, window_bounds = array<i64: 16, 32>}, {transform_indices = @transform_1, window_bounds = array<i64: 16, 32>}, {transform_indices = @transform_2, window_bounds = array<i64: 1, 1, 32>}]} {
    %c0 = arith.constant 0 : index
    %c0_0 = arith.constant 0 : index
    %0 = vector.load %arg1[%c0, %c0_0] : memref<16x32xf32, #tpu.memory_space<vmem>>, vector<16x32xf32>
    %c0_1 = arith.constant 0 : index
    %c0_2 = arith.constant 0 : index
    %1 = vector.load %arg2[%c0_1, %c0_2] : memref<16x32xf32, #tpu.memory_space<vmem>>, vector<16x32xf32>
    %cst = arith.constant 0.000000e+00 : f32
    %cst_3 = arith.constant 1.000000e+00 : f32
    %2 = vector.broadcast %cst : f32 to vector<16x32xf32>
    %3 = arith.maximumf %2, %1 : vector<16x32xf32>
    %4 = vector.broadcast %cst_3 : f32 to vector<16x32xf32>
    %5 = arith.minimumf %4, %3 : vector<16x32xf32>
    %cst_4 = arith.constant dense<0xFF800000> : vector<16xf32>
    %6 = vector.multi_reduction <maximumf>, %0, %cst_4 [1] : vector<16x32xf32> to vector<16xf32>
    %7 = vector.shape_cast %6 : vector<16xf32> to vector<16x1xf32>
    %8 = vector.broadcast %7 : vector<16x1xf32> to vector<16x32xf32>
    %9 = arith.subf %0, %8 : vector<16x32xf32>
    %10 = math.exp %9 : vector<16x32xf32>
    %cst_5 = arith.constant dense<0.000000e+00> : vector<16xf32>
    %11 = vector.multi_reduction <add>, %10, %cst_5 [1] : vector<16x32xf32> to vector<16xf32>
    %12 = vector.shape_cast %11 : vector<16xf32> to vector<16x1xf32>
    %cst_6 = arith.constant 9.99999993E-9 : f32
    %13 = vector.broadcast %cst_6 : f32 to vector<16x1xf32>
    %14 = arith.mulf %13, %12 : vector<16x1xf32>
    %15 = vector.broadcast %14 : vector<16x1xf32> to vector<16x32xf32>
    %16 = arith.addf %10, %15 : vector<16x32xf32>
    %17 = math.log %16 : vector<16x32xf32>
    %18 = math.log %12 : vector<16x1xf32>
    %19 = vector.broadcast %18 : vector<16x1xf32> to vector<16x32xf32>
    %20 = arith.subf %17, %19 : vector<16x32xf32>
    %21 = arith.mulf %5, %20 : vector<16x32xf32>
    %cst_7 = arith.constant dense<0.000000e+00> : vector<32xf32>
    %22 = vector.multi_reduction <add>, %21, %cst_7 [0] : vector<16x32xf32> to vector<32xf32>
    %23 = vector.shape_cast %22 : vector<32xf32> to vector<1x32xf32>
    %c0_8 = arith.constant 0 : index
    %c0_9 = arith.constant 0 : index
    %c0_10 = arith.constant 0 : index
    %24 = vector.load %arg3[%c0_8, %c0_9, %c0_10] : memref<1x1x32xf32, #tpu.memory_space<vmem>>, vector<1x1x32xf32>
    %25 = vector.shape_cast %24 : vector<1x1x32xf32> to vector<1x32xf32>
    %26 = vector.shape_cast %23 : vector<1x32xf32> to vector<1x1x32xf32>
    tpu.vector_store %arg3[%c0_8, %c0_9, %c0_10], %26 {strides = array<i32>} : memref<1x1x32xf32, #tpu.memory_space<vmem>>, vector<1x1x32xf32>,
    return
  }
  func.func @transform_0(%arg0: i32) -> (i32, i32) {
    %c0_i32 = arith.constant 0 : i32
    %c0_i32_0 = arith.constant 0 : i32
    return %arg0, %c0_i32 : i32, i32
  }
  func.func @transform_1(%arg0: i32) -> (i32, i32) {
    %c0_i32 = arith.constant 0 : i32
    %c0_i32_0 = arith.constant 0 : i32
    return %arg0, %c0_i32 : i32, i32
  }
  func.func @transform_2(%arg0: i32) -> (i32, i32, i32) {
    %c0_i32 = arith.constant 0 : i32
    %c0_i32_0 = arith.constant 0 : i32
    %c0_i32_1 = arith.constant 0 : i32
    return %arg0, %c0_i32, %c0_i32_0 : i32, i32, i32
  }
}

</mosaic_0001>

<llo_original>
// kernel: tpu_custom_call.1
$region0: #{tpu_custom_call.1}
  #allocation0 [shape = 'u32[]', space=smem, size = 0x4, offset = 0x4, fixed_abs, tag = 'smem constant byte address 0x4 - core index']
  #allocation1 [shape = 'u32[144,128]{1,0:T(1,128)}', space=vmem, size = 0x12000, scoped, tag = 'internal scratch']
  %s0 = inlined_call_operand.hbm [shape: f32[16,32], index: 0, kind: input, shape index: {}]
  %s1 = inlined_call_operand.hbm [shape: f32[16,32], index: 1, kind: input, shape index: {}]
  %s2 = inlined_call_operand.hbm [shape: f32[1,1,32], index: 2, kind: output, shape index: {}]
  %s3 = sld [smem:[#allocation0]]
  $region26: #{tpu_custom_call.1} parent=0
    _
  %s5 = ssub.s32 1, %s3
  %s6 = scalar_select 0, %s5, %s3
  $region1: #{tpu_custom_call.1} parent=0
    #allocation2 [shape = 'u8[8192]{0}', space=vmem, size = 0x2000, scoped, tag = 'input window, operand 0, single buffered']
    #allocation3 [shape = 's32[1]{0}', space=sflag, size = 0x4, scoped, tag = 'scoped memory for tpu_custom_call.1']
    #allocation4 [shape = 's32[1]{0}', space=sflag, size = 0x4, scoped, tag = 'scoped memory for tpu_custom_call.1']
    #allocation5 [shape = 'u8[8192]{0}', space=vmem, size = 0x2000, scoped, tag = 'input window, operand 1, single buffered']
    #allocation6 [shape = 's32[1]{0}', space=sflag, size = 0x4, scoped, tag = 'scoped memory for tpu_custom_call.1']
    #allocation7 [shape = 'u8[512]{0}', space=vmem, size = 0x400, scoped, tag = 'output window, operand 0, single buffered']
    %7 = vsyncpa [#allocation3], 0
    %8 = vsyncpa [#allocation6], 0
    %9 = vsyncpa [#allocation4], 0
    // Predicated region
    $region2: #{tpu_custom_call.1} parent=1 // pred_check
      _
    $region3: #{tpu_custom_call.1} parent=1 // pred_check_branch
      %11 = sbr.rel (0) target = $region5
    $region4: #{tpu_custom_call.1} parent=1 // pred_region
      %s13 = ssub.s32 256, 256
      %14 = vsyncadd [#allocation3], %s13
      %s15 = sshll.u32 [#allocation2], 4
      %s16 = int_to_ptr.vmem [resolvable:$true] %s15
      %21 = dma.hbm_to_vmem [thread:$0]  %s0, 256, %s16, [#allocation3], 128, 128, 8
    $region5: #{tpu_custom_call.1} parent=1 // pred_fallthru
      _
    // Predicated region
    $region6: #{tpu_custom_call.1} parent=1 // pred_check
      _
    $region7: #{tpu_custom_call.1} parent=1 // pred_check_branch
      %23 = sbr.rel (0) target = $region9
    $region8: #{tpu_custom_call.1} parent=1 // pred_region
      %s25 = ssub.s32 256, 256
      %26 = vsyncadd [#allocation6], %s25
      %s27 = sshll.u32 [#allocation5], 4
      %s28 = int_to_ptr.vmem [resolvable:$true] %s27
      %33 = dma.hbm_to_vmem [thread:$0]  %s1, 256, %s28, [#allocation6], 128, 128, 8
    $region9: #{tpu_custom_call.1} parent=1 // pred_fallthru
      _
    // Predicated region
    $region10: #{tpu_custom_call.1} parent=1 // pred_check
      _
    $region11: #{tpu_custom_call.1} parent=1 // pred_check_branch
      %35 = sbr.rel (0) target = $region13
    $region12: #{tpu_custom_call.1} parent=1 // pred_region
      %36 = dma.done [#allocation3], 256
    $region13: #{tpu_custom_call.1} parent=1 // pred_fallthru
      _
    // Predicated region
    $region14: #{tpu_custom_call.1} parent=1 // pred_check
      _
    $region15: #{tpu_custom_call.1} parent=1 // pred_check_branch
      %38 = sbr.rel (0) target = $region17
    $region16: #{tpu_custom_call.1} parent=1 // pred_region
      %39 = dma.done [#allocation6], 256
    $region17: #{tpu_custom_call.1} parent=1 // pred_fallthru
      _
    %v40 = vld [vmem:[#allocation2] sm:$0xff]
    %v41 = vld [vmem:[#allocation2 + $0x8] sm:$0xff]
    %v42 = vld [vmem:[#allocation5] sm:$0xff]
    %v43 = vld [vmem:[#allocation5 + $0x8] sm:$0xff]
    %v44 = vmax.f32 %v42, 0.0
    %v45 = vmax.f32 %v43, 0.0
    %v46 = vmin.f32 %v44, 1.0
    %v47 = vmin.f32 %v45, 1.0
    %vm48 = vcmask 261120
    %v49 = vsel %vm48, %v40, -inf
    %50 = vmax.xlane.f32.xlu0 %v49
    %v51 = vpop.xlane.xlu0 %50
    %v52 = vsel %vm48, %v41, -inf
    %53 = vmax.xlane.f32.xlu0 %v52
    %v54 = vpop.xlane.xlu0 %53
    %v55 = vsub.f32 %v40, %v51
    %v56 = vsub.f32 %v41, %v54
    %v57 = vmul.f32 %v55, 1.442695
    %v58 = vpow.pop %v57
    %v59 = vmul.f32 %v56, 1.442695
    %v60 = vpow.pop %v59
    %v61 = vsel %vm48, %v58, 0.0
    %62 = vadd.xlane.f32.xlu0 %v61
    %v63 = vpop.xlane.xlu0 %62
    %v64 = vsel %vm48, %v60, 0.0
    %65 = vadd.xlane.f32.xlu0 %v64
    %v66 = vpop.xlane.xlu0 %65
    %v67 = vmul.f32 %v63, 1e-08
    %v68 = vmul.f32 %v66, 1e-08
    %v69 = vadd.f32 %v58, %v67
    %v70 = vadd.f32 %v60, %v68
    %v71 = vlog2.pop %v69
    %v72 = vmul.f32 %v71, 0.6931472
    %v73 = vlog2.pop %v70
    %v74 = vmul.f32 %v73, 0.6931472
    %v75 = vlog2.pop %v63
    %v76 = vmul.f32 %v75, 0.6931472
    %v77 = vlog2.pop %v66
    %v78 = vmul.f32 %v77, 0.6931472
    %v79 = vsub.f32 %v72, %v76
    %v80 = vsub.f32 %v74, %v78
    %v81 = vmul.f32 %v46, %v79
    %v82 = vmul.f32 %v47, %v80
    %v83 = vsel %vm48, %v81, 0.0
    %v84 = vsel %vm48, %v82, 0.0
    %v85 = vadd.f32 %v83, %v84
    %v86 = vrot.slane %v85, 4
    %v87 = vadd.f32 %v85, %v86
    %v88 = vrot.slane %v87, 2
    %v89 = vadd.f32 %v87, %v88
    %v90 = vrot.slane %v89, 1
    %v91 = vadd.f32 %v89, %v90
    %vm92 = vcmask 253952
    %93 = vst.msk [vmem:[#allocation7] sm:$0x1] %vm92, %v91
    // Predicated region
    $region18: #{tpu_custom_call.1} parent=1 // pred_check
      _
    $region19: #{tpu_custom_call.1} parent=1 // pred_check_branch
      %95 = sbr.rel (0) target = $region21
    $region20: #{tpu_custom_call.1} parent=1 // pred_region
      %s97 = ssub.s32 16, 16
      %98 = vsyncadd [#allocation4], %s97
      %s100 = sshll.u32 [#allocation7], 4
      %s101 = int_to_ptr.vmem [resolvable:$true] %s100
      %103 = dma.vmem_to_hbm [thread:$0]  %s101, 16, %s2, [#allocation4]
    $region21: #{tpu_custom_call.1} parent=1 // pred_fallthru
      _
    // Predicated region
    $region22: #{tpu_custom_call.1} parent=1 // pred_check
      _
    $region23: #{tpu_custom_call.1} parent=1 // pred_check_branch
      %105 = sbr.rel (0) target = $region25
    $region24: #{tpu_custom_call.1} parent=1 // pred_region
      %106 = dma.done [#allocation4], 16
    $region25: #{tpu_custom_call.1} parent=1 // pred_fallthru
      _
    %107 = vsyncpa [#allocation3], 1
    %108 = vsyncpa [#allocation6], 1
    %109 = vsyncpa [#allocation4], 1

</llo_original>
